<compile_context>
chip_gen: v6e
topology: v6e:2x2x1
jax: 0.10.0
libtpu: 0.0.40
codegen_flags: <defaults>
</compile_context>

<pallas_src>
import functools

import jax
import jax.numpy as jnp
from jax.experimental import pallas as pl
from jax.experimental.pallas import tpu as pltpu

_LANE = 128
_ROW_ALIGN = 16  # bf16 packs two rows per sublane; 16 keeps vregs dense.


def _round_up(x, m):
    return ((x + m - 1) // m) * m


def _cdiv(a, b):
    return (a + b - 1) // b


def _mlp_kernel(x_ref, w1_ref, b1_ref, w2_ref, b2_ref, w3_ref, b3_ref, o_ref):
    # Layer 1: Linear + ReLU (MXU matmul in operand dtype, f32 accumulate).
    h = jnp.dot(x_ref[...], w1_ref[...],
                preferred_element_type=jnp.float32) + b1_ref[...]
    h = jnp.maximum(h, 0.0)
    # Layer 2: Linear + ReLU.
    h = jnp.dot(h.astype(w2_ref.dtype), w2_ref[...],
                preferred_element_type=jnp.float32) + b2_ref[...]
    h = jnp.maximum(h, 0.0)
    # Output layer: Linear, f32 bias add before the (narrow) store.
    o = jnp.dot(h.astype(w3_ref.dtype), w3_ref[...],
                preferred_element_type=jnp.float32) + b3_ref[...]
    o_ref[...] = o.astype(o_ref.dtype)


@functools.partial(
    jax.jit,
    static_argnames=("compute_dtype", "batch_tile", "single_block_max_rows"))
def feed_forward_nn(x, params, *, compute_dtype=jnp.bfloat16,
                    batch_tile=2048, single_block_max_rows=4096):
    """Forward pass of FeedForwardNN.

    x: [batch, input_size] (any float dtype; matches obs.to(torch.float32))
    params: dict with w1 [in,h1], b1 [1,h1], w2 [h1,h2], b2 [1,h2],
            w3 [h2,out], b3 [1,out]   (weights stored as [in, out]).
    """
    batch, in_dim = x.shape
    h1 = params["w1"].shape[1]
    h2 = params["w2"].shape[1]
    out_dim = params["w3"].shape[1]

    # --- lane-dense padding of the hidden dims only (exact: pads are zeros).
    #     The output feature dim stays narrow so HBM writeback is only the
    #     useful out_dim columns.
    h1p = _round_up(h1, _LANE)
    h2p = _round_up(h2, _LANE)

    w1 = jnp.pad(params["w1"], ((0, 0), (0, h1p - h1))).astype(compute_dtype)
    b1 = jnp.pad(params["b1"], ((0, 0), (0, h1p - h1))).astype(jnp.float32)
    w2 = jnp.pad(params["w2"],
                 ((0, h1p - h1), (0, h2p - h2))).astype(compute_dtype)
    b2 = jnp.pad(params["b2"], ((0, 0), (0, h2p - h2))).astype(jnp.float32)
    w3 = jnp.pad(params["w3"], ((0, h2p - h2), (0, 0))).astype(compute_dtype)
    b3 = params["b3"].astype(jnp.float32)

    # Cast x once, directly to the MXU operand dtype (no extra f32 pass).
    xc = x.astype(compute_dtype)

    bp16 = _round_up(batch, _ROW_ALIGN)

    if bp16 <= int(single_block_max_rows):
        # ---- small/medium batch: single block, no grid, no per-step overhead.
        if bp16 != batch:
            xc = jnp.pad(xc, ((0, bp16 - batch), (0, 0)))
        out = pl.pallas_call(
            _mlp_kernel,
            out_shape=jax.ShapeDtypeStruct((bp16, out_dim), jnp.float32),
        )(xc, w1, b1, w2, b2, w3, b3)
        return out[:batch] if bp16 != batch else out

    # ---- large batch: grid over the batch axis ("parallel" -> megacore).
    # Cap the tile so the grid keeps >= ~8 steps (lets v7x's 2 TCs split it),
    # but never drop below 256 rows (per-step overhead ~0.35us dominates tiny
    # tiles); align to 16 rows for bf16 sublane packing.
    cap = max(256, _round_up(_cdiv(bp16, 8), _ROW_ALIGN))
    tb = max(_ROW_ALIGN, min(int(batch_tile), cap, bp16))
    tb = _round_up(tb, _ROW_ALIGN)
    bp = _round_up(batch, tb)
    if bp != batch:
        xc = jnp.pad(xc, ((0, bp - batch), (0, 0)))

    grid = (bp // tb,)

    out = pl.pallas_call(
        _mlp_kernel,
        out_shape=jax.ShapeDtypeStruct((bp, out_dim), jnp.float32),
        grid_spec=pltpu.PrefetchScalarGridSpec(
            num_scalar_prefetch=0,
            grid=grid,
            in_specs=[
                # activations: tiled over the batch grid axis
                pl.BlockSpec((tb, in_dim), lambda i: (i, 0)),
                # weights / biases: constant index_map -> DMA'd once, resident
                pl.BlockSpec((in_dim, h1p), lambda i: (0, 0)),
                pl.BlockSpec((1, h1p), lambda i: (0, 0)),
                pl.BlockSpec((h1p, h2p), lambda i: (0, 0)),
                pl.BlockSpec((1, h2p), lambda i: (0, 0)),
                pl.BlockSpec((h2p, out_dim), lambda i: (0, 0)),
                pl.BlockSpec((1, out_dim), lambda i: (0, 0)),
            ],
            # narrow output: last block dim == full array dim (legal), so the
            # HBM writeback is only the useful bytes.
            out_specs=pl.BlockSpec((tb, out_dim), lambda i: (i, 0)),
        ),
        compiler_params=pltpu.CompilerParams(
            # batch axis is independent -> shard across TCs on v7x megacore
            dimension_semantics=("parallel",),
        ),
    )(xc, w1, b1, w2, b2, w3, b3)

    return out[:batch] if bp != batch else out


def init_params(key, input_size, hidden_layers, output_size):
    """Deterministic init mimicking nn.Linear's U(-1/sqrt(fan_in), 1/sqrt(fan_in))."""
    sizes = [input_size] + list(hidden_layers) + [output_size]
    params = {}
    for i in range(len(sizes) - 1):
        fan_in, fan_out = sizes[i], sizes[i + 1]
        key, kw, kb = jax.random.split(key, 3)
        bound = 1.0 / jnp.sqrt(jnp.float32(fan_in))
        # Stored as [in, out] (transpose of PyTorch's [out, in]).
        params[f"w{i+1}"] = jax.random.uniform(
            kw, (fan_in, fan_out), jnp.float32, -bound, bound)
        params[f"b{i+1}"] = jax.random.uniform(
            kb, (1, fan_out), jnp.float32, -bound, bound)
    return params


def feed_forward_nn_ref(x, params):
    """Pure-JAX reference for correctness checking."""
    x = x.astype(jnp.float32)
    h = jnp.maximum(x @ params["w1"] + params["b1"], 0.0)
    h = jnp.maximum(h @ params["w2"] + params["b2"], 0.0)
    return h @ params["w3"] + params["b3"]


if __name__ == "__main__":
    input_size = 16
    hidden_layers = [64, 64]
    output_size = 8

    key = jax.random.PRNGKey(0)
    key, kx1, kx2 = jax.random.split(key, 3)
    params = init_params(key, input_size, hidden_layers, output_size)

    # --- small batch, f32 compute, single-block (no-grid) path, tight tol ---
    batch = 8
    x = jax.random.normal(kx1, (batch, input_size), jnp.float32)
    out_f32 = feed_forward_nn(x, params, compute_dtype=jnp.float32)
    out_f32 = jax.block_until_ready(out_f32)
    ref = feed_forward_nn_ref(x, params)
    assert out_f32.shape == (batch, output_size)
    assert jnp.allclose(out_f32, ref, atol=1e-4, rtol=1e-4)

    # --- ragged batch, default bf16 path: (a) single-block, (b) forced grid ---
    batch2 = 200
    x2 = jax.random.normal(kx2, (batch2, input_size), jnp.float32)
    ref2 = feed_forward_nn_ref(x2, params)

    out_a = feed_forward_nn(x2, params)  # single-block path
    out_a = jax.block_until_ready(out_a)
    assert out_a.shape == (batch2, output_size)
    assert jnp.allclose(out_a, ref2, atol=5e-2, rtol=5e-2)

    out_b = feed_forward_nn(x2, params, compute_dtype=jnp.bfloat16,
                            batch_tile=64, single_block_max_rows=0)  # gridded
    out_b = jax.block_until_ready(out_b)
    assert out_b.shape == (batch2, output_size)
    assert jnp.allclose(out_b, ref2, atol=5e-2, rtol=5e-2)

    print("KERNEL_OK")
</pallas_src>

<mosaic_0001>
module attributes {stable_mosaic.version = 11 : i64} {
  func.func @_mlp_kernel(%arg0: memref<16x16xf32, #tpu.memory_space<vmem>>, %arg1: memref<16x128xf32, #tpu.memory_space<vmem>>, %arg2: memref<1x128xf32, #tpu.memory_space<vmem>>, %arg3: memref<128x128xf32, #tpu.memory_space<vmem>>, %arg4: memref<1x128xf32, #tpu.memory_space<vmem>>, %arg5: memref<128x8xf32, #tpu.memory_space<vmem>>, %arg6: memref<1x8xf32, #tpu.memory_space<vmem>>, %arg7: memref<16x8xf32, #tpu.memory_space<vmem>>) attributes {dimension_semantics = [], scalar_prefetch = 0 : i64, scratch_operands = 0 : i64, tpu.core_type = #tpu.core_type<tc>} {
    %c0 = arith.constant 0 : index
    %c0_0 = arith.constant 0 : index
    %0 = vector.load %arg0[%c0, %c0_0] : memref<16x16xf32, #tpu.memory_space<vmem>>, vector<16x16xf32>
    %c0_1 = arith.constant 0 : index
    %c0_2 = arith.constant 0 : index
    %1 = vector.load %arg1[%c0_1, %c0_2] : memref<16x128xf32, #tpu.memory_space<vmem>>, vector<16x128xf32>
    %cst = arith.constant dense<0.000000e+00> : vector<16x128xf32>
    %2 = tpu.matmul %0, %1, %cst {dimension_numbers = #tpu.dot_dimension_numbers<[1], [0], [0], [1], [0, 0, 1, 1], [], []>} : vector<16x16xf32>, vector<16x128xf32>, vector<16x128xf32> -> vector<16x128xf32>
    %c0_3 = arith.constant 0 : index
    %c0_4 = arith.constant 0 : index
    %3 = vector.load %arg2[%c0_3, %c0_4] : memref<1x128xf32, #tpu.memory_space<vmem>>, vector<1x128xf32>
    %4 = vector.broadcast %3 : vector<1x128xf32> to vector<16x128xf32>
    %5 = arith.addf %2, %4 : vector<16x128xf32>
    %cst_5 = arith.constant 0.000000e+00 : f32
    %6 = vector.broadcast %cst_5 : f32 to vector<16x128xf32>
    %7 = arith.maximumf %5, %6 : vector<16x128xf32>
    %c0_6 = arith.constant 0 : index
    %c0_7 = arith.constant 0 : index
    %8 = vector.load %arg3[%c0_6, %c0_7] : memref<128x128xf32, #tpu.memory_space<vmem>>, vector<128x128xf32>
    %cst_8 = arith.constant dense<0.000000e+00> : vector<16x128xf32>
    %9 = tpu.matmul %7, %8, %cst_8 {dimension_numbers = #tpu.dot_dimension_numbers<[1], [0], [0], [1], [0, 0, 1, 1], [], []>} : vector<16x128xf32>, vector<128x128xf32>, vector<16x128xf32> -> vector<16x128xf32>
    %c0_9 = arith.constant 0 : index
    %c0_10 = arith.constant 0 : index
    %10 = vector.load %arg4[%c0_9, %c0_10] : memref<1x128xf32, #tpu.memory_space<vmem>>, vector<1x128xf32>
    %11 = vector.broadcast %10 : vector<1x128xf32> to vector<16x128xf32>
    %12 = arith.addf %9, %11 : vector<16x128xf32>
    %cst_11 = arith.constant 0.000000e+00 : f32
    %13 = vector.broadcast %cst_11 : f32 to vector<16x128xf32>
    %14 = arith.maximumf %12, %13 : vector<16x128xf32>
    %c0_12 = arith.constant 0 : index
    %c0_13 = arith.constant 0 : index
    %15 = vector.load %arg5[%c0_12, %c0_13] : memref<128x8xf32, #tpu.memory_space<vmem>>, vector<128x8xf32>
    %cst_14 = arith.constant dense<0.000000e+00> : vector<16x8xf32>
    %16 = tpu.matmul %14, %15, %cst_14 {dimension_numbers = #tpu.dot_dimension_numbers<[1], [0], [0], [1], [0, 0, 1, 1], [], []>} : vector<16x128xf32>, vector<128x8xf32>, vector<16x8xf32> -> vector<16x8xf32>
    %c0_15 = arith.constant 0 : index
    %c0_16 = arith.constant 0 : index
    %17 = vector.load %arg6[%c0_15, %c0_16] : memref<1x8xf32, #tpu.memory_space<vmem>>, vector<1x8xf32>
    %18 = vector.broadcast %17 : vector<1x8xf32> to vector<16x8xf32>
    %19 = arith.addf %16, %18 : vector<16x8xf32>
    %c0_17 = arith.constant 0 : index
    %c0_18 = arith.constant 0 : index
    %20 = vector.load %arg7[%c0_17, %c0_18] : memref<16x8xf32, #tpu.memory_space<vmem>>, vector<16x8xf32>
    tpu.vector_store %arg7[%c0_17, %c0_18], %19 {strides = array<i32>} : memref<16x8xf32, #tpu.memory_space<vmem>>, vector<16x8xf32>,
    return
  }
}

</mosaic_0001>

<llo_original>
// kernel: feed_forward_nn.1
$region0: #{feed_forward_nn.1}
  #allocation0 [shape = 'u32[]', space=smem, size = 0x4, offset = 0x4, fixed_abs, tag = 'smem constant byte address 0x4 - core index']
  #allocation1 [shape = 'u32[144,128]{1,0:T(1,128)}', space=vmem, size = 0x12000, scoped, tag = 'internal scratch']
  %s0 = inlined_call_operand.vmem [shape: f32[16,16], index: 0, kind: input, shape index: {}]
  %s1 = inlined_call_operand.vmem [shape: f32[16,128], index: 1, kind: input, shape index: {}]
  %s2 = inlined_call_operand.vmem [shape: f32[1,128], index: 2, kind: input, shape index: {}]
  %s3 = inlined_call_operand.vmem [shape: f32[128,128], index: 3, kind: input, shape index: {}]
  %s4 = inlined_call_operand.vmem [shape: f32[1,128], index: 4, kind: input, shape index: {}]
  %s5 = inlined_call_operand.vmem [shape: f32[128,8], index: 5, kind: input, shape index: {}]
  %s6 = inlined_call_operand.vmem [shape: f32[1,8], index: 6, kind: input, shape index: {}]
  %s7 = inlined_call_operand.vmem [shape: f32[16,8], index: 7, kind: output, shape index: {}]
  %s8 = sld [smem:[#allocation0]]
  $region38: #{feed_forward_nn.1} parent=0
    _
  %s10 = ssub.s32 1, %s8
  %s11 = scalar_select 0, %s10, %s8
  // Predicated region
  $region2: #{feed_forward_nn.1} parent=0 // pred_check
    _
  $region3: #{feed_forward_nn.1} parent=0 // pred_check_branch
    %13 = sbr.rel (0) target = $region5
  $region4: #{feed_forward_nn.1} parent=0 // pred_region
    _
  $region5: #{feed_forward_nn.1} parent=0 // pred_fallthru
    _
  // Predicated region
  $region6: #{feed_forward_nn.1} parent=0 // pred_check
    _
  $region7: #{feed_forward_nn.1} parent=0 // pred_check_branch
    %15 = sbr.rel (0) target = $region9
  $region8: #{feed_forward_nn.1} parent=0 // pred_region
    _
  $region9: #{feed_forward_nn.1} parent=0 // pred_fallthru
    _
  // Predicated region
  $region10: #{feed_forward_nn.1} parent=0 // pred_check
    _
  $region11: #{feed_forward_nn.1} parent=0 // pred_check_branch
    %17 = sbr.rel (0) target = $region13
  $region12: #{feed_forward_nn.1} parent=0 // pred_region
    _
  $region13: #{feed_forward_nn.1} parent=0 // pred_fallthru
    _
  // Predicated region
  $region14: #{feed_forward_nn.1} parent=0 // pred_check
    _
  $region15: #{feed_forward_nn.1} parent=0 // pred_check_branch
    %19 = sbr.rel (0) target = $region17
  $region16: #{feed_forward_nn.1} parent=0 // pred_region
    _
  $region17: #{feed_forward_nn.1} parent=0 // pred_fallthru
    _
  // Predicated region
  $region18: #{feed_forward_nn.1} parent=0 // pred_check
    _
  $region19: #{feed_forward_nn.1} parent=0 // pred_check_branch
    %21 = sbr.rel (0) target = $region21
  $region20: #{feed_forward_nn.1} parent=0 // pred_region
    _
  $region21: #{feed_forward_nn.1} parent=0 // pred_fallthru
    _
  // Predicated region
  $region22: #{feed_forward_nn.1} parent=0 // pred_check
    _
  $region23: #{feed_forward_nn.1} parent=0 // pred_check_branch
    %23 = sbr.rel (0) target = $region25
  $region24: #{feed_forward_nn.1} parent=0 // pred_region
    _
  $region25: #{feed_forward_nn.1} parent=0 // pred_fallthru
    _
  // Predicated region
  $region26: #{feed_forward_nn.1} parent=0 // pred_check
    _
  $region27: #{feed_forward_nn.1} parent=0 // pred_check_branch
    %25 = sbr.rel (0) target = $region29
  $region28: #{feed_forward_nn.1} parent=0 // pred_region
    _
  $region29: #{feed_forward_nn.1} parent=0 // pred_fallthru
    _
  %v26 = vld [vmem:[%s0] sm:$0xff]
  %v27 = vld [vmem:[%s0 + $0x8] sm:$0xff]
  %v28 = vld [vmem:[%s1] sm:$0xff]
  %v29 = vld [vmem:[%s1 + $0x8] sm:$0xff]
  %v30 = vld [vmem:[%s2] sm:$0x1]
  %v32 = vlaneseq
  %v33 = vshrl.u32 %v32, 7
  %v34 = vsub.s32 0, %v33
  %v35 = vrot.slane %v30, %v34
  %vm37 = vcmask 130048
  %v39 = vsel %vm37, %v26, 0
  %v42 = vsel %vm37, %v27, 0
  %44 = vmatprep.subr.mxu0 0.0
  %45 = vmatpush1.msra.mxu0 0.0
  %46 = vmatprep.subr.mxu0 0.0
  %47 = vmatpush1.msra.mxu0 0.0
  %48 = vmatprep.subr.mxu0 0.0
  %49 = vmatpush1.msra.mxu0 0.0
  %50 = vmatprep.subr.mxu0 0.0
  %51 = vmatpush1.msra.mxu0 0.0
  %52 = vmatprep.subr.mxu0 0.0
  %53 = vmatpush1.msra.mxu0 0.0
  %54 = vmatprep.subr.mxu0 0.0
  %55 = vmatpush1.msra.mxu0 0.0
  %56 = vmatprep.subr.mxu0 0.0
  %57 = vmatpush1.msra.mxu0 0.0
  %58 = vmatprep.subr.mxu0 0.0
  %59 = vmatpush1.msra.mxu0 0.0
  %60 = vmatprep.subr.mxu0 0.0
  %61 = vmatpush1.msra.mxu0 0.0
  %62 = vmatprep.subr.mxu0 0.0
  %63 = vmatpush1.msra.mxu0 0.0
  %64 = vmatprep.subr.mxu0 0.0
  %65 = vmatpush1.msra.mxu0 0.0
  %66 = vmatprep.subr.mxu0 0.0
  %67 = vmatpush1.msra.mxu0 0.0
  %68 = vmatprep.subr.mxu0 0.0
  %69 = vmatpush1.msra.mxu0 0.0
  %70 = vmatprep.subr.mxu0 0.0
  %71 = vmatpush1.msra.mxu0 0.0
  %72 = vmatprep.subr.mxu0 0.0
  %73 = vmatpush1.msra.mxu0 %v29
  %74 = vmatprep.subr.mxu0 0.0
  %75 = vmatpush1.msra.mxu0 %v28
  %76 = vmatprep.subr.mxu0 0.0
  %77 = vmatpush2.msra.mxu0 0.0
  %78 = vmatprep.subr.mxu0 0.0
  %79 = vmatpush2.msra.mxu0 0.0
  %80 = vmatprep.subr.mxu0 0.0
  %81 = vmatpush2.msra.mxu0 0.0
  %82 = vmatprep.subr.mxu0 0.0
  %83 = vmatpush2.msra.mxu0 0.0
  %84 = vmatprep.subr.mxu0 0.0
  %85 = vmatpush2.msra.mxu0 0.0
  %86 = vmatprep.subr.mxu0 0.0
  %87 = vmatpush2.msra.mxu0 0.0
  %88 = vmatprep.subr.mxu0 0.0
  %89 = vmatpush2.msra.mxu0 0.0
  %90 = vmatprep.subr.mxu0 0.0
  %91 = vmatpush2.msra.mxu0 0.0
  %92 = vmatprep.subr.mxu0 0.0
  %93 = vmatpush2.msra.mxu0 0.0
  %94 = vmatprep.subr.mxu0 0.0
  %95 = vmatpush2.msra.mxu0 0.0
  %96 = vmatprep.subr.mxu0 0.0
  %97 = vmatpush2.msra.mxu0 0.0
  %98 = vmatprep.subr.mxu0 0.0
  %99 = vmatpush2.msra.mxu0 0.0
  %100 = vmatprep.subr.mxu0 0.0
  %101 = vmatpush2.msra.mxu0 0.0
  %102 = vmatprep.subr.mxu0 0.0
  %103 = vmatpush2.msra.mxu0 0.0
  %104 = vmatprep.subr.mxu0 0.0
  %105 = vmatpush2.msra.mxu0 0.0
  %106 = vmatprep.subr.mxu0 0.0
  %107 = vmatpush2.msra.mxu0 0.0
  %108 = vmatprep.mubr.f32.mxu0 0.0
  %109 = vmatmul.mubr.f32.gmra.mxu0 %v39
  %v110 = vpop.f32.mrf.mxu0
  %v111 = vadd.f32 %v35, %v110
  %v112 = vpop.f32.mrf.mxu0
  %113 = vmatprep.mubr.f32.mxu0 0.0
  %114 = vmatmul.mubr.f32.gmra.mxu0 %v42
  %v115 = vpop.f32.mrf.mxu0
  %v116 = vadd.f32 %v35, %v115
  %v117 = vpop.f32.mrf.mxu0
  %118 = vdwg.mxu0
  %v119 = vmax.f32 %v111, 0.0
  %v120 = vmax.f32 %v116, 0.0
  %v121 = vld [vmem:[%s3] sm:$0xff]
  %v122 = vld [vmem:[%s3 + $0x8] sm:$0xff]
  %v123 = vld [vmem:[%s3 + $0x10] sm:$0xff]
  %v124 = vld [vmem:[%s3 + $0x18] sm:$0xff]
  %v125 = vld [vmem:[%s3 + $0x20] sm:$0xff]
  %v126 = vld [vmem:[%s3 + $0x28] sm:$0xff]
  %v127 = vld [vmem:[%s3 + $0x30] sm:$0xff]
  %v128 = vld [vmem:[%s3 + $0x38] sm:$0xff]
  %v129 = vld [vmem:[%s3 + $0x40] sm:$0xff]
  %v130 = vld [vmem:[%s3 + $0x48] sm:$0xff]
  %v131 = vld [vmem:[%s3 + $0x50] sm:$0xff]
  %v132 = vld [vmem:[%s3 + $0x58] sm:$0xff]
  %v133 = vld [vmem:[%s3 + $0x60] sm:$0xff]
  %v134 = vld [vmem:[%s3 + $0x68] sm:$0xff]
  %v135 = vld [vmem:[%s3 + $0x70] sm:$0xff]
  %v136 = vld [vmem:[%s3 + $0x78] sm:$0xff]
  %v137 = vld [vmem:[%s4] sm:$0x1]
  %v139 = vlaneseq
  %v140 = vshrl.u32 %v139, 7
  %v141 = vsub.s32 0, %v140
  %v142 = vrot.slane %v137, %v141
  %144 = vmatprep.subr.mxu0 0.0
  %145 = vmatpush1.msra.mxu0 %v136
  %146 = vmatprep.subr.mxu0 0.0
  %147 = vmatpush1.msra.mxu0 %v135
  %148 = vmatprep.subr.mxu0 0.0
  %149 = vmatpush1.msra.mxu0 %v134
  %150 = vmatprep.subr.mxu0 0.0
  %151 = vmatpush1.msra.mxu0 %v133
  %152 = vmatprep.subr.mxu0 0.0
  %153 = vmatpush1.msra.mxu0 %v132
  %154 = vmatprep.subr.mxu0 0.0
  %155 = vmatpush1.msra.mxu0 %v131
  %156 = vmatprep.subr.mxu0 0.0
  %157 = vmatpush1.msra.mxu0 %v130
  %158 = vmatprep.subr.mxu0 0.0
  %159 = vmatpush1.msra.mxu0 %v129
  %160 = vmatprep.subr.mxu0 0.0
  %161 = vmatpush1.msra.mxu0 %v128
  %162 = vmatprep.subr.mxu0 0.0
  %163 = vmatpush1.msra.mxu0 %v127
  %164 = vmatprep.subr.mxu0 0.0
  %165 = vmatpush1.msra.mxu0 %v126
  %166 = vmatprep.subr.mxu0 0.0
  %167 = vmatpush1.msra.mxu0 %v125
  %168 = vmatprep.subr.mxu0 0.0
  %169 = vmatpush1.msra.mxu0 %v124
  %170 = vmatprep.subr.mxu0 0.0
  %171 = vmatpush1.msra.mxu0 %v123
  %172 = vmatprep.subr.mxu0 0.0
  %173 = vmatpush1.msra.mxu0 %v122
  %174 = vmatprep.subr.mxu0 0.0
  %175 = vmatpush1.msra.mxu0 %v121
  %176 = vmatprep.subr.mxu0 0.0
  %177 = vmatpush2.msra.mxu0 0.0
  %178 = vmatprep.subr.mxu0 0.0
  %179 = vmatpush2.msra.mxu0 0.0
  %180 = vmatprep.subr.mxu0 0.0
  %181 = vmatpush2.msra.mxu0 0.0
  %182 = vmatprep.subr.mxu0 0.0
  %183 = vmatpush2.msra.mxu0 0.0
  %184 = vmatprep.subr.mxu0 0.0
  %185 = vmatpush2.msra.mxu0 0.0
  %186 = vmatprep.subr.mxu0 0.0
  %187 = vmatpush2.msra.mxu0 0.0
  %188 = vmatprep.subr.mxu0 0.0
  %189 = vmatpush2.msra.mxu0 0.0
  %190 = vmatprep.subr.mxu0 0.0
  %191 = vmatpush2.msra.mxu0 0.0
  %192 = vmatprep.subr.mxu0 0.0
  %193 = vmatpush2.msra.mxu0 0.0
  %194 = vmatprep.subr.mxu0 0.0
  %195 = vmatpush2.msra.mxu0 0.0
  %196 = vmatprep.subr.mxu0 0.0
  %197 = vmatpush2.msra.mxu0 0.0
  %198 = vmatprep.subr.mxu0 0.0
  %199 = vmatpush2.msra.mxu0 0.0
  %200 = vmatprep.subr.mxu0 0.0
  %201 = vmatpush2.msra.mxu0 0.0
  %202 = vmatprep.subr.mxu0 0.0
  %203 = vmatpush2.msra.mxu0 0.0
  %204 = vmatprep.subr.mxu0 0.0
  %205 = vmatpush2.msra.mxu0 0.0
  %206 = vmatprep.subr.mxu0 0.0
  %207 = vmatpush2.msra.mxu0 0.0
  %208 = vmatprep.mubr.f32.mxu0 0.0
  %209 = vmatmul.mubr.f32.gmra.mxu0 %v119
  %v210 = vpop.f32.mrf.mxu0
  %v211 = vadd.f32 %v142, %v210
  %v212 = vpop.f32.mrf.mxu0
  %213 = vmatprep.mubr.f32.mxu0 0.0
  %214 = vmatmul.mubr.f32.gmra.mxu0 %v120
  %v215 = vpop.f32.mrf.mxu0
  %v216 = vadd.f32 %v142, %v215
  %v217 = vpop.f32.mrf.mxu0
  %218 = vdwg.mxu0
  %v219 = vmax.f32 %v211, 0.0
  %v220 = vmax.f32 %v216, 0.0
  %v221 = vld [vmem:[%s5] sm:$0xff]
  %v222 = vld [vmem:[%s5 + $0x8] sm:$0xff]
  %v223 = vld [vmem:[%s5 + $0x10] sm:$0xff]
  %v224 = vld [vmem:[%s5 + $0x18] sm:$0xff]
  %v225 = vld [vmem:[%s5 + $0x20] sm:$0xff]
  %v226 = vld [vmem:[%s5 + $0x28] sm:$0xff]
  %v227 = vld [vmem:[%s5 + $0x30] sm:$0xff]
  %v228 = vld [vmem:[%s5 + $0x38] sm:$0xff]
  %v229 = vld [vmem:[%s5 + $0x40] sm:$0xff]
  %v230 = vld [vmem:[%s5 + $0x48] sm:$0xff]
  %v231 = vld [vmem:[%s5 + $0x50] sm:$0xff]
  %v232 = vld [vmem:[%s5 + $0x58] sm:$0xff]
  %v233 = vld [vmem:[%s5 + $0x60] sm:$0xff]
  %v234 = vld [vmem:[%s5 + $0x68] sm:$0xff]
  %v235 = vld [vmem:[%s5 + $0x70] sm:$0xff]
  %v236 = vld [vmem:[%s5 + $0x78] sm:$0xff]
  %v237 = vld [vmem:[%s6] sm:$0x1]
  %v239 = vlaneseq
  %v240 = vshrl.u32 %v239, 7
  %v241 = vsub.s32 0, %v240
  %v242 = vrot.slane %v237, %v241
  %244 = vmatprep.subr.mxu0 0.0
  %245 = vmatpush1.msra.mxu0 %v236
  %246 = vmatprep.subr.mxu0 0.0
  %247 = vmatpush1.msra.mxu0 %v235
  %248 = vmatprep.subr.mxu0 0.0
  %249 = vmatpush1.msra.mxu0 %v234
  %250 = vmatprep.subr.mxu0 0.0
  %251 = vmatpush1.msra.mxu0 %v233
  %252 = vmatprep.subr.mxu0 0.0
  %253 = vmatpush1.msra.mxu0 %v232
  %254 = vmatprep.subr.mxu0 0.0
  %255 = vmatpush1.msra.mxu0 %v231
  %256 = vmatprep.subr.mxu0 0.0
  %257 = vmatpush1.msra.mxu0 %v230
  %258 = vmatprep.subr.mxu0 0.0
  %259 = vmatpush1.msra.mxu0 %v229
  %260 = vmatprep.subr.mxu0 0.0
  %261 = vmatpush1.msra.mxu0 %v228
  %262 = vmatprep.subr.mxu0 0.0
  %263 = vmatpush1.msra.mxu0 %v227
  %264 = vmatprep.subr.mxu0 0.0
  %265 = vmatpush1.msra.mxu0 %v226
  %266 = vmatprep.subr.mxu0 0.0
  %267 = vmatpush1.msra.mxu0 %v225
  %268 = vmatprep.subr.mxu0 0.0
  %269 = vmatpush1.msra.mxu0 %v224
  %270 = vmatprep.subr.mxu0 0.0
  %271 = vmatpush1.msra.mxu0 %v223
  %272 = vmatprep.subr.mxu0 0.0
  %273 = vmatpush1.msra.mxu0 %v222
  %274 = vmatprep.subr.mxu0 0.0
  %275 = vmatpush1.msra.mxu0 %v221
  %276 = vmatprep.subr.mxu0 0.0
  %277 = vmatpush2.msra.mxu0 0.0
  %278 = vmatprep.subr.mxu0 0.0
  %279 = vmatpush2.msra.mxu0 0.0
  %280 = vmatprep.subr.mxu0 0.0
  %281 = vmatpush2.msra.mxu0 0.0
  %282 = vmatprep.subr.mxu0 0.0
  %283 = vmatpush2.msra.mxu0 0.0
  %284 = vmatprep.subr.mxu0 0.0
  %285 = vmatpush2.msra.mxu0 0.0
  %286 = vmatprep.subr.mxu0 0.0
  %287 = vmatpush2.msra.mxu0 0.0
  %288 = vmatprep.subr.mxu0 0.0
  %289 = vmatpush2.msra.mxu0 0.0
  %290 = vmatprep.subr.mxu0 0.0
  %291 = vmatpush2.msra.mxu0 0.0
  %292 = vmatprep.subr.mxu0 0.0
  %293 = vmatpush2.msra.mxu0 0.0
  %294 = vmatprep.subr.mxu0 0.0
  %295 = vmatpush2.msra.mxu0 0.0
  %296 = vmatprep.subr.mxu0 0.0
  %297 = vmatpush2.msra.mxu0 0.0
  %298 = vmatprep.subr.mxu0 0.0
  %299 = vmatpush2.msra.mxu0 0.0
  %300 = vmatprep.subr.mxu0 0.0
  %301 = vmatpush2.msra.mxu0 0.0
  %302 = vmatprep.subr.mxu0 0.0
  %303 = vmatpush2.msra.mxu0 0.0
  %304 = vmatprep.subr.mxu0 0.0
  %305 = vmatpush2.msra.mxu0 0.0
  %306 = vmatprep.subr.mxu0 0.0
  %307 = vmatpush2.msra.mxu0 0.0
  %308 = vmatprep.mubr.f32.mxu0 0.0
  %309 = vmatmul.mubr.f32.gmra.mxu0 %v219
  %v310 = vpop.f32.mrf.mxu0
  %v311 = vadd.f32 %v242, %v310
  %v312 = vpop.f32.mrf.mxu0
  %313 = vmatprep.mubr.f32.mxu0 0.0
  %314 = vmatmul.mubr.f32.gmra.mxu0 %v220
  %v315 = vpop.f32.mrf.mxu0
  %v316 = vadd.f32 %v242, %v315
  %v317 = vpop.f32.mrf.mxu0
  %318 = vdwg.mxu0
  %vm319 = vcmask 64512
  %320 = vst.msk [vmem:[%s7] sm:$0xff] %vm319, %v311
  %321 = vst.msk [vmem:[%s7 + $0x8] sm:$0xff] %vm319, %v316
  // Predicated region
  $region30: #{feed_forward_nn.1} parent=0 // pred_check
    _
  $region31: #{feed_forward_nn.1} parent=0 // pred_check_branch
    %323 = sbr.rel (0) target = $region33
  $region32: #{feed_forward_nn.1} parent=0 // pred_region
    _
  $region33: #{feed_forward_nn.1} parent=0 // pred_fallthru
    _
  // Predicated region
  $region34: #{feed_forward_nn.1} parent=0 // pred_check
    _
  $region35: #{feed_forward_nn.1} parent=0 // pred_check_branch
    %325 = sbr.rel (0) target = $region37
  $region36: #{feed_forward_nn.1} parent=0 // pred_region
    _
  $region37: #{feed_forward_nn.1} parent=0 // pred_fallthru
    _

</llo_original>
